<compile_context>
chip_gen: v7x
topology: tpu7x:2x2x1
jax: 0.10.0
libtpu: 0.0.40
codegen_flags: <defaults>
</compile_context>

<pallas_src>
import jax
import jax.numpy as jnp
from jax.experimental import pallas as pl
from jax.experimental.pallas import tpu as pltpu


def _make_taper_kernel(inv_cutoff: float):
    def kernel(x_ref, o_ref):
        # Compute in f32 regardless of storage dtype; cast back on the store.
        x = x_ref[...].astype(jnp.float32)
        # Clamp folds the `x > cutoff` mask into the polynomial: the Horner
        # form below is exactly 0.0 at xs == 1.0, so one `min` replaces a
        # compare + select.
        # TODO(synk): torch does out[mask] = out[mask] * 0.0, which keeps
        # NaN/Inf produced at masked (x > cutoff) slots; here those become 0.
        xs = jnp.minimum(x * inv_cutoff, 1.0)
        xs3 = xs * xs * xs
        # 1 - 10*xs^3 + 15*xs^4 - 6*xs^5   (Horner on the cubic factor)
        poly = 1.0 + xs3 * (-10.0 + xs * (15.0 - 6.0 * xs))
        o_ref[...] = poly.astype(o_ref.dtype)
    return kernel


def _round_up(a: int, b: int) -> int:
    return ((a + b - 1) // b) * b


def _budget():
    """Generation-aware (target_block_bytes, vmem_limit_bytes)."""
    try:
        info = pltpu.get_tpu_info()
        vmem = int(getattr(info, "vmem_capacity_bytes"))
    except Exception:
        vmem = None
    if vmem is None:
        # Unknown chip: conservative blocks, modest explicit limit.
        return 2 << 20, 32 << 20
    if vmem <= 80 * (1 << 20):
        # v7x-class (64 MiB VMEM, ~3.2 TB/s HBM): bigger blocks amortize the
        # ~0.35 us per-step overhead.  in+out double-buffered = 32 MiB < 48.
        return 8 << 20, 48 << 20
    # v5e / v6e class (128 MiB physical VMEM): 4 MiB blocks = 16 MiB double
    # buffered; raise the scoped limit explicitly so v5e's 16 MiB default
    # cannot trip.
    return 4 << 20, 64 << 20


def taper(x: jax.Array, cutoff: float) -> jax.Array:
    """Pallas Taper forward. x: any shape, float32/bfloat16."""
    orig_shape = x.shape
    dtype = x.dtype
    n = x.size
    if n == 0:
        return jnp.zeros(orig_shape, dtype)

    itemsize = jnp.dtype(dtype).itemsize
    sub = 8 if itemsize >= 4 else (16 if itemsize == 2 else 32)
    lanes = 128
    block_bytes, vmem_limit = _budget()

    kernel = _make_taper_kernel(1.0 / float(cutoff))
    cost = pl.CostEstimate(flops=10 * n, transcendentals=0,
                           bytes_accessed=2 * n * itemsize)

    # Collapse to (B, S, L) keeping the trailing two dims intact: this reshape
    # is layout-free (no relayout copy) for ndim >= 2.
    if len(orig_shape) >= 2:
        S, L = orig_shape[-2], orig_shape[-1]
        B = n // (S * L)
    else:
        S, L, B = 1, n, 1

    # VMEM footprint of one (S, L) slab, padded to the (sub, 128) tile grid.
    slab_bytes = _round_up(S, sub) * _round_up(L, lanes) * itemsize

    if slab_bytes <= block_bytes:
        # General path: tile only the leading axis.  The block's last two dims
        # equal the full array dims, so no (8,128) alignment is required and
        # any ragged last block is masked by Pallas (no jnp.pad / slice).
        x3 = x.reshape(B, S, L)
        tile_b = max(1, min(B, block_bytes // slab_bytes))
        out3 = pl.pallas_call(
            kernel,
            out_shape=jax.ShapeDtypeStruct((B, S, L), dtype),
            grid=(pl.cdiv(B, tile_b),),
            in_specs=[pl.BlockSpec((tile_b, S, L), lambda i: (i, 0, 0))],
            out_specs=pl.BlockSpec((tile_b, S, L), lambda i: (i, 0, 0)),
            compiler_params=pltpu.CompilerParams(
                dimension_semantics=("parallel",),
                vmem_limit_bytes=vmem_limit),
            cost_estimate=cost,
        )(x3)
        return out3.reshape(orig_shape)

    if L % lanes == 0 and S % sub == 0:
        # Trailing slab too big for one block, but fully aligned: collapse to
        # 2-D (layout-free) and tile both axes; ragged row edge is masked.
        R = B * S
        x2 = x.reshape(R, L)
        tile_c = min(L, max(lanes,
                            (block_bytes // (sub * itemsize)) // lanes * lanes))
        row_bytes = tile_c * itemsize
        tile_r = max(sub, min((block_bytes // row_bytes) // sub * sub,
                              _round_up(R, sub)))
        out2 = pl.pallas_call(
            kernel,
            out_shape=jax.ShapeDtypeStruct((R, L), dtype),
            grid=(pl.cdiv(R, tile_r), pl.cdiv(L, tile_c)),
            in_specs=[pl.BlockSpec((tile_r, tile_c), lambda i, j: (i, j))],
            out_specs=pl.BlockSpec((tile_r, tile_c), lambda i, j: (i, j)),
            compiler_params=pltpu.CompilerParams(
                dimension_semantics=("parallel", "parallel"),
                vmem_limit_bytes=vmem_limit),
            cost_estimate=cost,
        )(x2)
        return out2.reshape(orig_shape)

    # Rare fallback: huge *and* misaligned trailing dims.  Accept one relayout
    # to a lane-dense (rows, 128) slab (padded tail handled by Pallas masking
    # of the ragged last block, not by jnp.pad).
    # TODO(synk): fuse into the producer/consumer to avoid this copy if such
    # shapes ever matter in practice.
    rows = pl.cdiv(n, lanes)
    xf = x.reshape(-1)
    if rows * lanes != n:
        xf = jnp.pad(xf, (0, rows * lanes - n))
    x2 = xf.reshape(rows, lanes)
    tile_r = max(sub, min(_round_up(rows, sub),
                          (block_bytes // (lanes * itemsize)) // sub * sub))
    out2 = pl.pallas_call(
        kernel,
        out_shape=jax.ShapeDtypeStruct((rows, lanes), dtype),
        grid=(pl.cdiv(rows, tile_r),),
        in_specs=[pl.BlockSpec((tile_r, lanes), lambda i: (i, 0))],
        out_specs=pl.BlockSpec((tile_r, lanes), lambda i: (i, 0)),
        compiler_params=pltpu.CompilerParams(
            dimension_semantics=("parallel",),
            vmem_limit_bytes=vmem_limit),
        cost_estimate=cost,
    )(x2)
    return out2.reshape(-1)[:n].reshape(orig_shape)


def taper_ref(x: jax.Array, cutoff: float) -> jax.Array:
    """Pure-JAX reference (same op order as the PyTorch module)."""
    mask = x > cutoff
    xs = x * (1.0 / cutoff)
    x3 = xs * xs * xs
    x4 = x3 * xs
    x5 = x4 * xs
    out = 1.0 - 6.0 * x5 + 15.0 * x4 - 10.0 * x3
    return jnp.where(mask, 0.0, out)


if __name__ == "__main__":
    key = jax.random.PRNGKey(0)
    cutoff = 5.0
    # Typical use: pairwise distances; some values exceed the cutoff.
    x = jax.random.uniform(key, (2, 4, 16, 16), dtype=jnp.float32) * 8.0

    out = jax.block_until_ready(taper(x, cutoff))
    ref = taper_ref(x, cutoff)

    assert out.shape == x.shape and out.dtype == x.dtype
    # Horner vs expanded polynomial + different FMA association between Mosaic
    # and XLA -> ~1e-6 absolute rounding noise is expected.
    assert jnp.allclose(out, ref, atol=1e-5, rtol=1e-5), "mismatch vs reference"

    print("KERNEL_OK")
</pallas_src>

<mosaic_0001>
module attributes {stable_mosaic.version = 11 : i64} {
  func.func @kernel(%arg0: i32, %arg1: memref<8x16x16xf32, #tpu.memory_space<vmem>>, %arg2: memref<8x16x16xf32, #tpu.memory_space<vmem>>) attributes {dimension_semantics = [#tpu.dimension_semantics<parallel>], iteration_bounds = array<i64: 1>, scalar_prefetch = 0 : i64, scratch_operands = 0 : i64, tpu.core_type = #tpu.core_type<tc>, window_params = [{transform_indices = @transform_0, window_bounds = array<i64: 8, 16, 16>}, {transform_indices = @transform_1, window_bounds = array<i64: 8, 16, 16>}]} {
    %c0 = arith.constant 0 : index
    %c0_0 = arith.constant 0 : index
    %c0_1 = arith.constant 0 : index
    %0 = vector.load %arg1[%c0, %c0_0, %c0_1] : memref<8x16x16xf32, #tpu.memory_space<vmem>>, vector<8x16x16xf32>
    %cst = arith.constant 2.000000e-01 : f32
    %1 = vector.broadcast %cst : f32 to vector<8x16x16xf32>
    %2 = arith.mulf %0, %1 : vector<8x16x16xf32>
    %cst_2 = arith.constant 1.000000e+00 : f32
    %3 = vector.broadcast %cst_2 : f32 to vector<8x16x16xf32>
    %4 = arith.minimumf %2, %3 : vector<8x16x16xf32>
    %5 = arith.mulf %4, %4 : vector<8x16x16xf32>
    %6 = arith.mulf %5, %4 : vector<8x16x16xf32>
    %cst_3 = arith.constant 6.000000e+00 : f32
    %7 = vector.broadcast %cst_3 : f32 to vector<8x16x16xf32>
    %8 = arith.mulf %7, %4 : vector<8x16x16xf32>
    %cst_4 = arith.constant 1.500000e+01 : f32
    %9 = vector.broadcast %cst_4 : f32 to vector<8x16x16xf32>
    %10 = arith.subf %9, %8 : vector<8x16x16xf32>
    %11 = arith.mulf %4, %10 : vector<8x16x16xf32>
    %cst_5 = arith.constant -1.000000e+01 : f32
    %12 = vector.broadcast %cst_5 : f32 to vector<8x16x16xf32>
    %13 = arith.addf %12, %11 : vector<8x16x16xf32>
    %14 = arith.mulf %6, %13 : vector<8x16x16xf32>
    %cst_6 = arith.constant 1.000000e+00 : f32
    %15 = vector.broadcast %cst_6 : f32 to vector<8x16x16xf32>
    %16 = arith.addf %15, %14 : vector<8x16x16xf32>
    %c0_7 = arith.constant 0 : index
    %c0_8 = arith.constant 0 : index
    %c0_9 = arith.constant 0 : index
    %17 = vector.load %arg2[%c0_7, %c0_8, %c0_9] : memref<8x16x16xf32, #tpu.memory_space<vmem>>, vector<8x16x16xf32>
    tpu.vector_store %arg2[%c0_7, %c0_8, %c0_9], %16 {strides = array<i32>} : memref<8x16x16xf32, #tpu.memory_space<vmem>>, vector<8x16x16xf32>,
    return
  }
  func.func @transform_0(%arg0: i32) -> (i32, i32, i32) {
    %c0_i32 = arith.constant 0 : i32
    %c0_i32_0 = arith.constant 0 : i32
    %c0_i32_1 = arith.constant 0 : i32
    return %arg0, %c0_i32, %c0_i32_0 : i32, i32, i32
  }
  func.func @transform_1(%arg0: i32) -> (i32, i32, i32) {
    %c0_i32 = arith.constant 0 : i32
    %c0_i32_0 = arith.constant 0 : i32
    %c0_i32_1 = arith.constant 0 : i32
    return %arg0, %c0_i32, %c0_i32_0 : i32, i32, i32
  }
}

</mosaic_0001>

<llo_original>
// kernel: tpu_custom_call.1
$region0: #{tpu_custom_call.1}
  #allocation0 [shape = 'u32[]', space=smem, size = 0x4, offset = 0x4, fixed_abs, tag = 'smem constant byte address 0x4 - core index']
  #allocation1 [shape = 'u32[144,128]{1,0:T(1,128)}', space=vmem, size = 0x12000, scoped, tag = 'internal scratch']
  %s0 = inlined_call_operand.hbm [shape: f32[8,16,16], index: 0, kind: input, shape index: {}]
  %s1 = inlined_call_operand.hbm [shape: f32[8,16,16], index: 1, kind: output, shape index: {}]
  %s2 = sld [smem:[#allocation0]]
  $region18: #{tpu_custom_call.1} parent=0
    _
  %s4 = ssub.s32 1, %s2
  %s5 = scalar_select 0, %s4, %s2
  $region1: #{tpu_custom_call.1} parent=0
    #allocation2 [shape = 'u8[65536]{0}', space=vmem, size = 0x10000, scoped, tag = 'input window, operand 0, single buffered']
    #allocation3 [shape = 's32[1]{0}', space=sflag, size = 0x4, scoped, tag = 'scoped memory for tpu_custom_call.1']
    #allocation4 [shape = 's32[1]{0}', space=sflag, size = 0x4, scoped, tag = 'scoped memory for tpu_custom_call.1']
    #allocation5 [shape = 'u8[65536]{0}', space=vmem, size = 0x10000, scoped, tag = 'output window, operand 0, single buffered']
    %6 = vsyncpa [#allocation3], 0
    %7 = vsyncpa [#allocation4], 0
    // Predicated region
    $region2: #{tpu_custom_call.1} parent=1 // pred_check
      _
    $region3: #{tpu_custom_call.1} parent=1 // pred_check_branch
      %9 = sbr.rel (0) target = $region5
    $region4: #{tpu_custom_call.1} parent=1 // pred_region
      %s11 = ssub.s32 2048, 2048
      %12 = vsyncadd [#allocation3], %s11
      %s13 = sshll.u32 [#allocation2], 4
      %s14 = int_to_ptr.vmem [resolvable:$true] %s13
      %19 = dma.hbm_to_vmem [thread:$0]  %s0, 2048, %s14, [#allocation3], 128, 128, 8
    $region5: #{tpu_custom_call.1} parent=1 // pred_fallthru
      _
    // Predicated region
    $region6: #{tpu_custom_call.1} parent=1 // pred_check
      _
    $region7: #{tpu_custom_call.1} parent=1 // pred_check_branch
      %21 = sbr.rel (0) target = $region9
    $region8: #{tpu_custom_call.1} parent=1 // pred_region
      %22 = dma.done [#allocation3], 2048
    $region9: #{tpu_custom_call.1} parent=1 // pred_fallthru
      _
    %v23 = vld [vmem:[#allocation2] sm:$0xff]
    %v24 = vld [vmem:[#allocation2 + $0x8] sm:$0xff]
    %v25 = vld [vmem:[#allocation2 + $0x10] sm:$0xff]
    %v26 = vld [vmem:[#allocation2 + $0x18] sm:$0xff]
    %v27 = vld [vmem:[#allocation2 + $0x20] sm:$0xff]
    %v28 = vld [vmem:[#allocation2 + $0x28] sm:$0xff]
    %v29 = vld [vmem:[#allocation2 + $0x30] sm:$0xff]
    %v30 = vld [vmem:[#allocation2 + $0x38] sm:$0xff]
    %v31 = vld [vmem:[#allocation2 + $0x40] sm:$0xff]
    %v32 = vld [vmem:[#allocation2 + $0x48] sm:$0xff]
    %v33 = vld [vmem:[#allocation2 + $0x50] sm:$0xff]
    %v34 = vld [vmem:[#allocation2 + $0x58] sm:$0xff]
    %v35 = vld [vmem:[#allocation2 + $0x60] sm:$0xff]
    %v36 = vld [vmem:[#allocation2 + $0x68] sm:$0xff]
    %v37 = vld [vmem:[#allocation2 + $0x70] sm:$0xff]
    %v38 = vld [vmem:[#allocation2 + $0x78] sm:$0xff]
    %v39 = vmul.f32 %v23, 0.2
    %v40 = vmul.f32 %v24, 0.2
    %v41 = vmul.f32 %v25, 0.2
    %v42 = vmul.f32 %v26, 0.2
    %v43 = vmul.f32 %v27, 0.2
    %v44 = vmul.f32 %v28, 0.2
    %v45 = vmul.f32 %v29, 0.2
    %v46 = vmul.f32 %v30, 0.2
    %v47 = vmul.f32 %v31, 0.2
    %v48 = vmul.f32 %v32, 0.2
    %v49 = vmul.f32 %v33, 0.2
    %v50 = vmul.f32 %v34, 0.2
    %v51 = vmul.f32 %v35, 0.2
    %v52 = vmul.f32 %v36, 0.2
    %v53 = vmul.f32 %v37, 0.2
    %v54 = vmul.f32 %v38, 0.2
    %v55 = vmin.f32 %v39, 1.0
    %v56 = vmin.f32 %v40, 1.0
    %v57 = vmin.f32 %v41, 1.0
    %v58 = vmin.f32 %v42, 1.0
    %v59 = vmin.f32 %v43, 1.0
    %v60 = vmin.f32 %v44, 1.0
    %v61 = vmin.f32 %v45, 1.0
    %v62 = vmin.f32 %v46, 1.0
    %v63 = vmin.f32 %v47, 1.0
    %v64 = vmin.f32 %v48, 1.0
    %v65 = vmin.f32 %v49, 1.0
    %v66 = vmin.f32 %v50, 1.0
    %v67 = vmin.f32 %v51, 1.0
    %v68 = vmin.f32 %v52, 1.0
    %v69 = vmin.f32 %v53, 1.0
    %v70 = vmin.f32 %v54, 1.0
    %v71 = vmul.f32 %v55, %v55
    %v72 = vmul.f32 %v56, %v56
    %v73 = vmul.f32 %v57, %v57
    %v74 = vmul.f32 %v58, %v58
    %v75 = vmul.f32 %v59, %v59
    %v76 = vmul.f32 %v60, %v60
    %v77 = vmul.f32 %v61, %v61
    %v78 = vmul.f32 %v62, %v62
    %v79 = vmul.f32 %v63, %v63
    %v80 = vmul.f32 %v64, %v64
    %v81 = vmul.f32 %v65, %v65
    %v82 = vmul.f32 %v66, %v66
    %v83 = vmul.f32 %v67, %v67
    %v84 = vmul.f32 %v68, %v68
    %v85 = vmul.f32 %v69, %v69
    %v86 = vmul.f32 %v70, %v70
    %v87 = vmul.f32 %v71, %v55
    %v88 = vmul.f32 %v72, %v56
    %v89 = vmul.f32 %v73, %v57
    %v90 = vmul.f32 %v74, %v58
    %v91 = vmul.f32 %v75, %v59
    %v92 = vmul.f32 %v76, %v60
    %v93 = vmul.f32 %v77, %v61
    %v94 = vmul.f32 %v78, %v62
    %v95 = vmul.f32 %v79, %v63
    %v96 = vmul.f32 %v80, %v64
    %v97 = vmul.f32 %v81, %v65
    %v98 = vmul.f32 %v82, %v66
    %v99 = vmul.f32 %v83, %v67
    %v100 = vmul.f32 %v84, %v68
    %v101 = vmul.f32 %v85, %v69
    %v102 = vmul.f32 %v86, %v70
    %v103 = vmul.f32 %v55, 6.0
    %v104 = vmul.f32 %v56, 6.0
    %v105 = vmul.f32 %v57, 6.0
    %v106 = vmul.f32 %v58, 6.0
    %v107 = vmul.f32 %v59, 6.0
    %v108 = vmul.f32 %v60, 6.0
    %v109 = vmul.f32 %v61, 6.0
    %v110 = vmul.f32 %v62, 6.0
    %v111 = vmul.f32 %v63, 6.0
    %v112 = vmul.f32 %v64, 6.0
    %v113 = vmul.f32 %v65, 6.0
    %v114 = vmul.f32 %v66, 6.0
    %v115 = vmul.f32 %v67, 6.0
    %v116 = vmul.f32 %v68, 6.0
    %v117 = vmul.f32 %v69, 6.0
    %v118 = vmul.f32 %v70, 6.0
    %v119 = vsub.f32 15.0, %v103
    %v120 = vsub.f32 15.0, %v104
    %v121 = vsub.f32 15.0, %v105
    %v122 = vsub.f32 15.0, %v106
    %v123 = vsub.f32 15.0, %v107
    %v124 = vsub.f32 15.0, %v108
    %v125 = vsub.f32 15.0, %v109
    %v126 = vsub.f32 15.0, %v110
    %v127 = vsub.f32 15.0, %v111
    %v128 = vsub.f32 15.0, %v112
    %v129 = vsub.f32 15.0, %v113
    %v130 = vsub.f32 15.0, %v114
    %v131 = vsub.f32 15.0, %v115
    %v132 = vsub.f32 15.0, %v116
    %v133 = vsub.f32 15.0, %v117
    %v134 = vsub.f32 15.0, %v118
    %v135 = vmul.f32 %v55, %v119
    %v136 = vmul.f32 %v56, %v120
    %v137 = vmul.f32 %v57, %v121
    %v138 = vmul.f32 %v58, %v122
    %v139 = vmul.f32 %v59, %v123
    %v140 = vmul.f32 %v60, %v124
    %v141 = vmul.f32 %v61, %v125
    %v142 = vmul.f32 %v62, %v126
    %v143 = vmul.f32 %v63, %v127
    %v144 = vmul.f32 %v64, %v128
    %v145 = vmul.f32 %v65, %v129
    %v146 = vmul.f32 %v66, %v130
    %v147 = vmul.f32 %v67, %v131
    %v148 = vmul.f32 %v68, %v132
    %v149 = vmul.f32 %v69, %v133
    %v150 = vmul.f32 %v70, %v134
    %v151 = vadd.f32 %v135, -10.0
    %v152 = vadd.f32 %v136, -10.0
    %v153 = vadd.f32 %v137, -10.0
    %v154 = vadd.f32 %v138, -10.0
    %v155 = vadd.f32 %v139, -10.0
    %v156 = vadd.f32 %v140, -10.0
    %v157 = vadd.f32 %v141, -10.0
    %v158 = vadd.f32 %v142, -10.0
    %v159 = vadd.f32 %v143, -10.0
    %v160 = vadd.f32 %v144, -10.0
    %v161 = vadd.f32 %v145, -10.0
    %v162 = vadd.f32 %v146, -10.0
    %v163 = vadd.f32 %v147, -10.0
    %v164 = vadd.f32 %v148, -10.0
    %v165 = vadd.f32 %v149, -10.0
    %v166 = vadd.f32 %v150, -10.0
    %v167 = vmul.f32 %v87, %v151
    %v168 = vmul.f32 %v88, %v152
    %v169 = vmul.f32 %v89, %v153
    %v170 = vmul.f32 %v90, %v154
    %v171 = vmul.f32 %v91, %v155
    %v172 = vmul.f32 %v92, %v156
    %v173 = vmul.f32 %v93, %v157
    %v174 = vmul.f32 %v94, %v158
    %v175 = vmul.f32 %v95, %v159
    %v176 = vmul.f32 %v96, %v160
    %v177 = vmul.f32 %v97, %v161
    %v178 = vmul.f32 %v98, %v162
    %v179 = vmul.f32 %v99, %v163
    %v180 = vmul.f32 %v100, %v164
    %v181 = vmul.f32 %v101, %v165
    %v182 = vmul.f32 %v102, %v166
    %v183 = vadd.f32 %v167, 1.0
    %v184 = vadd.f32 %v168, 1.0
    %v185 = vadd.f32 %v169, 1.0
    %v186 = vadd.f32 %v170, 1.0
    %v187 = vadd.f32 %v171, 1.0
    %v188 = vadd.f32 %v172, 1.0
    %v189 = vadd.f32 %v173, 1.0
    %v190 = vadd.f32 %v174, 1.0
    %v191 = vadd.f32 %v175, 1.0
    %v192 = vadd.f32 %v176, 1.0
    %v193 = vadd.f32 %v177, 1.0
    %v194 = vadd.f32 %v178, 1.0
    %v195 = vadd.f32 %v179, 1.0
    %v196 = vadd.f32 %v180, 1.0
    %v197 = vadd.f32 %v181, 1.0
    %v198 = vadd.f32 %v182, 1.0
    %vm199 = vcmask 130048
    %200 = vst.msk [vmem:[#allocation5] sm:$0xff] %vm199, %v183
    %201 = vst.msk [vmem:[#allocation5 + $0x8] sm:$0xff] %vm199, %v184
    %202 = vst.msk [vmem:[#allocation5 + $0x10] sm:$0xff] %vm199, %v185
    %203 = vst.msk [vmem:[#allocation5 + $0x18] sm:$0xff] %vm199, %v186
    %204 = vst.msk [vmem:[#allocation5 + $0x20] sm:$0xff] %vm199, %v187
    %205 = vst.msk [vmem:[#allocation5 + $0x28] sm:$0xff] %vm199, %v188
    %206 = vst.msk [vmem:[#allocation5 + $0x30] sm:$0xff] %vm199, %v189
    %207 = vst.msk [vmem:[#allocation5 + $0x38] sm:$0xff] %vm199, %v190
    %208 = vst.msk [vmem:[#allocation5 + $0x40] sm:$0xff] %vm199, %v191
    %209 = vst.msk [vmem:[#allocation5 + $0x48] sm:$0xff] %vm199, %v192
    %210 = vst.msk [vmem:[#allocation5 + $0x50] sm:$0xff] %vm199, %v193
    %211 = vst.msk [vmem:[#allocation5 + $0x58] sm:$0xff] %vm199, %v194
    %212 = vst.msk [vmem:[#allocation5 + $0x60] sm:$0xff] %vm199, %v195
    %213 = vst.msk [vmem:[#allocation5 + $0x68] sm:$0xff] %vm199, %v196
    %214 = vst.msk [vmem:[#allocation5 + $0x70] sm:$0xff] %vm199, %v197
    %215 = vst.msk [vmem:[#allocation5 + $0x78] sm:$0xff] %vm199, %v198
    // Predicated region
    $region10: #{tpu_custom_call.1} parent=1 // pred_check
      _
    $region11: #{tpu_custom_call.1} parent=1 // pred_check_branch
      %217 = sbr.rel (0) target = $region13
    $region12: #{tpu_custom_call.1} parent=1 // pred_region
      %s219 = ssub.s32 2048, 2048
      %220 = vsyncadd [#allocation4], %s219
      %s221 = sshll.u32 [#allocation5], 4
      %s222 = int_to_ptr.vmem [resolvable:$true] %s221
      %227 = dma.vmem_to_hbm [thread:$0]  %s222, 2048, %s1, [#allocation4], 128, 128, 8
    $region13: #{tpu_custom_call.1} parent=1 // pred_fallthru
      _
    // Predicated region
    $region14: #{tpu_custom_call.1} parent=1 // pred_check
      _
    $region15: #{tpu_custom_call.1} parent=1 // pred_check_branch
      %229 = sbr.rel (0) target = $region17
    $region16: #{tpu_custom_call.1} parent=1 // pred_region
      %230 = dma.done [#allocation4], 2048
    $region17: #{tpu_custom_call.1} parent=1 // pred_fallthru
      _
    %231 = vsyncpa [#allocation3], 1
    %232 = vsyncpa [#allocation4], 1

</llo_original>
